<compile_context>
chip_gen: v6e
topology: v6e:2x2x1
jax: 0.10.0
libtpu: 0.0.40
codegen_flags: <defaults>
</compile_context>

<pallas_src>
import jax
import jax.numpy as jnp
from jax.experimental import pallas as pl
from jax.experimental.pallas import tpu as pltpu


def _elementwise_kernel(x_ref, o_ref):
    x = x_ref[...]
    # Literal PyTorch sequence (no algebraic folding -> identical rounding).
    x = x + 2.0
    x = x - 1.0
    x = x * 3.0
    x = x / 4.0
    o_ref[...] = (x * x).astype(o_ref.dtype)


def _chip_tuning():
    """(max_block_bytes, vmem_limit_bytes) chosen per TPU generation."""
    try:
        kind = jax.devices()[0].device_kind.lower()
    except Exception:  # pragma: no cover - defensive, fall back to safe default
        kind = ""
    if "v5e" in kind or "v5 lite" in kind or "v5lite" in kind:
        # v5e: ~0.8 TB/s HBM, 16 MiB default scoped VMEM -> keep 2 MiB blocks
        # (4 x 2 MiB double-buffered in+out = 8 MiB scoped, well inside limit).
        return 2 << 20, 16 << 20
    if "v7" in kind or "tpu7" in kind:
        # v7x: 3.2 TB/s HBM but only 64 MiB physical VMEM.  8 MiB blocks
        # (32 MiB scoped for 2x-buffered in+out); cap scoped VMEM at 48 MiB.
        return 8 << 20, 48 << 20
    if "v6" in kind:
        # v6e: 1.4 TB/s HBM, 128 MiB physical VMEM -> 8 MiB blocks, 64 MiB scoped.
        return 8 << 20, 64 << 20
    # Unknown / other (v4, v5p, CPU interpreter...): safe everywhere.
    return 4 << 20, 32 << 20


def _plan_tiling(rows, cols, itemsize, max_block_bytes):
    """Pick (block_rows, grid_rows) for a (rows, cols) slab.

    * block byte footprint targets `max_block_bytes` (dtype-aware).
    * block_rows is a multiple of the sublane packing (8/16/32 for 32/16/8-bit).
    * inputs above ~256 KiB always get >= 2 grid steps (megacore + pipelining).
    * genuinely tiny inputs get a single full-extent block (legal since the
      block dims equal the full array dims).
    """
    sub_align = max(8, 32 // itemsize)          # 8 f32, 16 bf16, 32 int8/fp8
    row_bytes = cols * itemsize
    tiny_rows = max(sub_align, (256 * 1024) // row_bytes)
    if rows <= tiny_rows:
        return rows, 1

    max_block_rows = max(sub_align,
                         (max_block_bytes // row_bytes) // sub_align * sub_align)
    # At least two grid steps: split roughly in half if the whole array would
    # otherwise fit in one block.
    half_rows = pl.cdiv(pl.cdiv(rows, 2), sub_align) * sub_align
    block_rows = min(max_block_rows, half_rows)
    grid_rows = pl.cdiv(rows, block_rows)       # partial last block is fine
    return block_rows, grid_rows


def pt_module_forward(x):
    """y = ((((x + 2) - 1) * 3) / 4) ** 2 elementwise via a Pallas TPU kernel."""
    orig_shape = x.shape

    # PyTorch's '/ 4' is true division: integer inputs promote to float.
    if not jnp.issubdtype(x.dtype, jnp.floating):
        x = x.astype(jnp.float32)
    dtype = x.dtype
    n = x.size
    if n == 0:
        return jnp.zeros(orig_shape, dtype)
    itemsize = jnp.dtype(dtype).itemsize

    # Lane-dense column width: largest of {1024, 512, 256, 128} dividing n.
    cols = None
    for c in (1024, 512, 256, 128):
        if n % c == 0:
            cols = c
            break

    flat = x.reshape(-1)
    if cols is None:
        # Ragged element count: minimal padding to the next multiple of 128
        # lanes (<= 127 extra elements).  Typical ML shapes never hit this.
        # TODO(synk): mask the tail store in-kernel (scalar-prefetch n + iota
        # mask) to drop the pad/slice copies entirely on ragged shapes.
        cols = 128
        rows = pl.cdiv(n, cols)
        flat = jnp.pad(flat, (0, rows * cols - n))
        padded = True
    else:
        rows = n // cols
        padded = False
    x2d = flat.reshape(rows, cols)

    max_block_bytes, vmem_limit_bytes = _chip_tuning()
    block_rows, grid_rows = _plan_tiling(rows, cols, itemsize, max_block_bytes)

    out2d = pl.pallas_call(
        _elementwise_kernel,
        out_shape=jax.ShapeDtypeStruct((rows, cols), dtype),
        grid_spec=pltpu.PrefetchScalarGridSpec(
            num_scalar_prefetch=0,
            grid=(grid_rows,),
            in_specs=[pl.BlockSpec((block_rows, cols), lambda i: (i, 0))],
            out_specs=pl.BlockSpec((block_rows, cols), lambda i: (i, 0)),
        ),
        compiler_params=pltpu.CompilerParams(
            dimension_semantics=("parallel",),
            vmem_limit_bytes=vmem_limit_bytes,
        ),
        cost_estimate=pl.CostEstimate(
            flops=5 * n,
            transcendentals=0,
            bytes_accessed=2 * n * itemsize,
        ),
    )(x2d)

    out = out2d.reshape(-1)
    if padded:
        out = out[:n]
    return out.reshape(orig_shape)


def _reference(x):
    if not jnp.issubdtype(x.dtype, jnp.floating):
        x = x.astype(jnp.float32)
    return ((((x + 2.0) - 1.0) * 3.0) / 4.0) ** 2


if __name__ == "__main__":
    key = jax.random.PRNGKey(0)

    # Main check: module-consistent small shape (hits the no-pad fast path).
    x = jax.random.normal(key, (2, 4, 16, 16), dtype=jnp.float32)
    y = jax.block_until_ready(pt_module_forward(x))
    y_ref = _reference(x)
    assert y.shape == x.shape and y.dtype == x.dtype
    assert jnp.allclose(y, y_ref, rtol=1e-6, atol=1e-6)

    # Ragged element count (exercises the minimally-padded path).
    x2 = jax.random.normal(jax.random.PRNGKey(1), (2, 3, 5, 7), dtype=jnp.float32)
    y2 = jax.block_until_ready(pt_module_forward(x2))
    assert y2.shape == x2.shape and y2.dtype == x2.dtype
    assert jnp.allclose(y2, _reference(x2), rtol=1e-6, atol=1e-6)

    # Mid-size shape that forces >= 2 grid steps (megacore / pipelined path).
    x3 = jax.random.normal(jax.random.PRNGKey(2), (256, 1024), dtype=jnp.float32)
    y3 = jax.block_until_ready(pt_module_forward(x3))
    assert y3.shape == x3.shape and y3.dtype == x3.dtype
    assert jnp.allclose(y3, _reference(x3), rtol=1e-6, atol=1e-6)

    print("KERNEL_OK")
</pallas_src>

<mosaic_0001>
module attributes {stable_mosaic.version = 11 : i64} {
  func.func @_elementwise_kernel(%arg0: i32, %arg1: memref<2x1024xf32, #tpu.memory_space<vmem>>, %arg2: memref<2x1024xf32, #tpu.memory_space<vmem>>) attributes {dimension_semantics = [#tpu.dimension_semantics<parallel>], iteration_bounds = array<i64: 1>, scalar_prefetch = 0 : i64, scratch_operands = 0 : i64, tpu.core_type = #tpu.core_type<tc>, window_params = [{transform_indices = @transform_0, window_bounds = array<i64: 2, 1024>}, {transform_indices = @transform_1, window_bounds = array<i64: 2, 1024>}]} {
    %c0 = arith.constant 0 : index
    %c0_0 = arith.constant 0 : index
    %0 = vector.load %arg1[%c0, %c0_0] : memref<2x1024xf32, #tpu.memory_space<vmem>>, vector<2x1024xf32>
    %cst = arith.constant 2.000000e+00 : f32
    %1 = vector.broadcast %cst : f32 to vector<2x1024xf32>
    %2 = arith.addf %0, %1 : vector<2x1024xf32>
    %cst_1 = arith.constant 1.000000e+00 : f32
    %3 = vector.broadcast %cst_1 : f32 to vector<2x1024xf32>
    %4 = arith.subf %2, %3 : vector<2x1024xf32>
    %cst_2 = arith.constant 3.000000e+00 : f32
    %5 = vector.broadcast %cst_2 : f32 to vector<2x1024xf32>
    %6 = arith.mulf %4, %5 : vector<2x1024xf32>
    %cst_3 = arith.constant 4.000000e+00 : f32
    %7 = vector.broadcast %cst_3 : f32 to vector<2x1024xf32>
    %8 = arith.divf %6, %7 : vector<2x1024xf32>
    %9 = arith.mulf %8, %8 : vector<2x1024xf32>
    %c0_4 = arith.constant 0 : index
    %c0_5 = arith.constant 0 : index
    %10 = vector.load %arg2[%c0_4, %c0_5] : memref<2x1024xf32, #tpu.memory_space<vmem>>, vector<2x1024xf32>
    tpu.vector_store %arg2[%c0_4, %c0_5], %9 {strides = array<i32>} : memref<2x1024xf32, #tpu.memory_space<vmem>>, vector<2x1024xf32>,
    return
  }
  func.func @transform_0(%arg0: i32) -> (i32, i32) {
    %c0_i32 = arith.constant 0 : i32
    %c0_i32_0 = arith.constant 0 : i32
    return %arg0, %c0_i32 : i32, i32
  }
  func.func @transform_1(%arg0: i32) -> (i32, i32) {
    %c0_i32 = arith.constant 0 : i32
    %c0_i32_0 = arith.constant 0 : i32
    return %arg0, %c0_i32 : i32, i32
  }
}

</mosaic_0001>

<llo_original>
// kernel: tpu_custom_call.1
$region0: #{tpu_custom_call.1}
  #allocation0 [shape = 'u32[]', space=smem, size = 0x4, offset = 0x4, fixed_abs, tag = 'smem constant byte address 0x4 - core index']
  #allocation1 [shape = 'u32[144,128]{1,0:T(1,128)}', space=vmem, size = 0x12000, scoped, tag = 'internal scratch']
  %s0 = inlined_call_operand.hbm [shape: f32[2,1024], index: 0, kind: input, shape index: {}]
  %s1 = inlined_call_operand.hbm [shape: f32[2,1024], index: 1, kind: output, shape index: {}]
  %s2 = sld [smem:[#allocation0]]
  $region18: #{tpu_custom_call.1} parent=0
    _
  %s4 = ssub.s32 1, %s2
  %s5 = scalar_select 0, %s4, %s2
  $region1: #{tpu_custom_call.1} parent=0
    #allocation2 [shape = 'u8[8192]{0}', space=vmem, size = 0x2000, scoped, tag = 'input window, operand 0, single buffered']
    #allocation3 [shape = 's32[1]{0}', space=sflag, size = 0x4, scoped, tag = 'scoped memory for tpu_custom_call.1']
    #allocation4 [shape = 's32[1]{0}', space=sflag, size = 0x4, scoped, tag = 'scoped memory for tpu_custom_call.1']
    #allocation5 [shape = 'u8[8192]{0}', space=vmem, size = 0x2000, scoped, tag = 'output window, operand 0, single buffered']
    %6 = vsyncpa [#allocation3], 0
    %7 = vsyncpa [#allocation4], 0
    // Predicated region
    $region2: #{tpu_custom_call.1} parent=1 // pred_check
      _
    $region3: #{tpu_custom_call.1} parent=1 // pred_check_branch
      %9 = sbr.rel (0) target = $region5
    $region4: #{tpu_custom_call.1} parent=1 // pred_region
      %s11 = ssub.s32 256, 256
      %12 = vsyncadd [#allocation3], %s11
      %s14 = sshll.u32 [#allocation2], 4
      %s15 = int_to_ptr.vmem [resolvable:$true] %s14
      %17 = dma.hbm_to_vmem [thread:$0]  %s0, 256, %s15, [#allocation3]
    $region5: #{tpu_custom_call.1} parent=1 // pred_fallthru
      _
    // Predicated region
    $region6: #{tpu_custom_call.1} parent=1 // pred_check
      _
    $region7: #{tpu_custom_call.1} parent=1 // pred_check_branch
      %19 = sbr.rel (0) target = $region9
    $region8: #{tpu_custom_call.1} parent=1 // pred_region
      %20 = dma.done [#allocation3], 256
    $region9: #{tpu_custom_call.1} parent=1 // pred_fallthru
      _
    %v21 = vld [vmem:[#allocation2] sm:$0xff]
    %v22 = vld [vmem:[#allocation2 + $0x8] sm:$0xff]
    %v23 = vadd.f32 %v21, 2.0
    %v24 = vadd.f32 %v22, 2.0
    %v25 = vsub.f32 %v23, 1.0
    %v26 = vsub.f32 %v24, 1.0
    %v27 = vmul.f32 %v25, 3.0
    %v28 = vmul.f32 %v26, 3.0
    %v29 = vrcp.pop 4.0
    %v30 = vmul.f32 %v27, %v29
    %v31 = vmul.f32 %v28, %v29
    %v32 = vmul.f32 %v30, %v30
    %v33 = vmul.f32 %v31, %v31
    %34 = vst [vmem:[#allocation5] sm:$0xff] %v32
    %35 = vst [vmem:[#allocation5 + $0x8] sm:$0xff] %v33
    // Predicated region
    $region10: #{tpu_custom_call.1} parent=1 // pred_check
      _
    $region11: #{tpu_custom_call.1} parent=1 // pred_check_branch
      %37 = sbr.rel (0) target = $region13
    $region12: #{tpu_custom_call.1} parent=1 // pred_region
      %s39 = ssub.s32 256, 256
      %40 = vsyncadd [#allocation4], %s39
      %s42 = sshll.u32 [#allocation5], 4
      %s43 = int_to_ptr.vmem [resolvable:$true] %s42
      %45 = dma.vmem_to_hbm [thread:$0]  %s43, 256, %s1, [#allocation4]
    $region13: #{tpu_custom_call.1} parent=1 // pred_fallthru
      _
    // Predicated region
    $region14: #{tpu_custom_call.1} parent=1 // pred_check
      _
    $region15: #{tpu_custom_call.1} parent=1 // pred_check_branch
      %47 = sbr.rel (0) target = $region17
    $region16: #{tpu_custom_call.1} parent=1 // pred_region
      %48 = dma.done [#allocation4], 256
    $region17: #{tpu_custom_call.1} parent=1 // pred_fallthru
      _
    %49 = vsyncpa [#allocation3], 1
    %50 = vsyncpa [#allocation4], 1

</llo_original>
